<compile_context>
chip_gen: v7x
topology: tpu7x:2x2x1
jax: 0.10.0
libtpu: 0.0.40
codegen_flags: <defaults>
</compile_context>

<pallas_src>
import functools
from math import sqrt

import jax
import jax.numpy as jnp
from jax import lax
from jax.experimental import pallas as pl
from jax.experimental.pallas import tpu as pltpu


_LANE = 128
_VMEM_LIMIT = 48 * 1024 * 1024       # safe on v5e/v6e (128 MiB) and v7x (64 MiB/TC)
_RESIDENT_W_BYTES = 6 * 1024 * 1024  # hold weight fully in VMEM below this size
_RESIDENT_MAX_DIM = 2048             # cap padded K/N so x / out tiles stay small


def _round_up(v, m):
    return ((v + m - 1) // m) * m


def _sublane(dtype):
    # Packed sublane multiple: 8 rows for 4-byte, 16 for 2-byte, 32 for 1-byte.
    return {4: 8, 2: 16, 1: 32}.get(jnp.dtype(dtype).itemsize, 8)


def _pick_tile_m(M, sub, max_tm=512):
    """Largest M tile (multiple of `sub`) whose zero padding wastes <= ~12.5%."""
    cands = [t for t in (512, 256, 128, 64, 32, 16, 8) if sub <= t <= max_tm]
    if not cands:
        cands = [sub]
    for t in cands:
        if (_round_up(M, t) - M) * 8 <= max(M, 1):
            return t
    return cands[-1]


def _pick_div_tile(dim, pref):
    """Largest tile <= pref dividing `dim` (dim is already a multiple of 128)."""
    for t in (pref, 512, 256, 128):
        if t <= pref and t <= dim and dim % t == 0:
            return t
    return _LANE


def _matmul_nt(x_tile, w_tile):
    # x (tm, tk) . w (tn, tk), contracted along dim 1 of both -> (tm, tn) in f32
    # on the MXU, without materializing a transposed weight tile.
    return lax.dot_general(
        x_tile, w_tile,
        dimension_numbers=(((1,), (1,)), ((), ())),
        preferred_element_type=jnp.float32)


# ---------- Resident-weight path: whole weight lives in VMEM, no K loop. ----------

def _resident_kernel_bias(x_ref, w_ref, b_ref, o_ref, *, scale):
    acc = _matmul_nt(x_ref[...], w_ref[...])
    o_ref[...] = (acc * scale + b_ref[...]).astype(o_ref.dtype)


def _resident_kernel_nobias(x_ref, w_ref, o_ref, *, scale):
    o_ref[...] = (_matmul_nt(x_ref[...], w_ref[...]) * scale).astype(o_ref.dtype)


# ---------- Streaming path: 3-D grid (M, N, K) with an f32 VMEM accumulator. ----------

def _stream_kernel_bias(x_ref, w_ref, b_ref, o_ref, acc_ref, *, scale):
    k = pl.program_id(2)
    part = _matmul_nt(x_ref[...], w_ref[...])

    @pl.when(k == 0)
    def _():
        acc_ref[...] = part          # overwrite at k==0: saves a zero-fill+add pass

    @pl.when(k > 0)
    def _():
        acc_ref[...] += part

    @pl.when(k == pl.num_programs(2) - 1)
    def _():
        o_ref[...] = (acc_ref[...] * scale + b_ref[...]).astype(o_ref.dtype)


def _stream_kernel_nobias(x_ref, w_ref, o_ref, acc_ref, *, scale):
    k = pl.program_id(2)
    part = _matmul_nt(x_ref[...], w_ref[...])

    @pl.when(k == 0)
    def _():
        acc_ref[...] = part

    @pl.when(k > 0)
    def _():
        acc_ref[...] += part

    @pl.when(k == pl.num_programs(2) - 1)
    def _():
        o_ref[...] = (acc_ref[...] * scale).astype(o_ref.dtype)


def equalized_linear_forward(x, weight, bias=None, *, tm=512, tn=512, tk=512):
    """y = x @ (weight * scale).T + bias with scale = sqrt(2)/sqrt(c_in).

    x: (..., c_in), weight: (c_out, c_in), bias: (c_out,) or None.
    """
    orig_shape = x.shape
    c_in = orig_shape[-1]
    c_out = weight.shape[0]
    scale = sqrt(2.0) / sqrt(c_in)

    x2d = x.reshape(-1, c_in)
    M = x2d.shape[0]
    sub = _sublane(x.dtype)

    Kp = _round_up(c_in, _LANE)
    Np = _round_up(c_out, _LANE)

    tm = _pick_tile_m(M, sub, max_tm=tm)
    Mp = _round_up(M, tm)

    w_itemsize = jnp.dtype(weight.dtype).itemsize
    resident = (Np * Kp * w_itemsize <= _RESIDENT_W_BYTES
                and Kp <= _RESIDENT_MAX_DIM
                and Np <= _RESIDENT_MAX_DIM)

    # Fast path: skip padding copies entirely when shapes are already aligned.
    # (Weight/bias padding only happens when c_in/c_out are not multiples of 128.)
    if (Mp, Kp) == (M, c_in):
        xp = x2d
    else:
        xp = jnp.zeros((Mp, Kp), dtype=x.dtype).at[:M, :c_in].set(x2d)

    if (Np, Kp) == (c_out, c_in):
        wp = weight
    else:
        wp = jnp.zeros((Np, Kp), dtype=weight.dtype).at[:c_out, :c_in].set(weight)

    bp = None
    if bias is not None:
        if Np == c_out:
            bp = bias.astype(jnp.float32).reshape(1, Np)
        else:
            bp = jnp.zeros((1, Np), dtype=jnp.float32).at[0, :c_out].set(
                bias.astype(jnp.float32))

    out_shape = jax.ShapeDtypeStruct((Mp, Np), x.dtype)

    if resident:
        grid = (Mp // tm,)
        # Keep >= 2 parallel tiles when possible so both v7x TensorCores get work.
        if grid[0] == 1 and tm >= 2 * sub and Mp % (2 * sub) == 0:
            tm = Mp // 2
            grid = (2,)

        x_spec = pl.BlockSpec((tm, Kp), lambda i: (i, 0))
        w_spec = pl.BlockSpec((Np, Kp), lambda i: (0, 0))   # resident: fetched once
        o_spec = pl.BlockSpec((tm, Np), lambda i: (i, 0))
        compiler_params = pltpu.CompilerParams(
            dimension_semantics=("parallel",),
            vmem_limit_bytes=_VMEM_LIMIT)

        if bias is not None:
            b_spec = pl.BlockSpec((1, Np), lambda i: (0, 0))
            out = pl.pallas_call(
                functools.partial(_resident_kernel_bias, scale=scale),
                out_shape=out_shape,
                grid_spec=pltpu.PrefetchScalarGridSpec(
                    num_scalar_prefetch=0, grid=grid,
                    in_specs=[x_spec, w_spec, b_spec],
                    out_specs=o_spec),
                compiler_params=compiler_params,
            )(xp, wp, bp)
        else:
            out = pl.pallas_call(
                functools.partial(_resident_kernel_nobias, scale=scale),
                out_shape=out_shape,
                grid_spec=pltpu.PrefetchScalarGridSpec(
                    num_scalar_prefetch=0, grid=grid,
                    in_specs=[x_spec, w_spec],
                    out_specs=o_spec),
                compiler_params=compiler_params,
            )(xp, wp)
    else:
        tn = _pick_div_tile(Np, tn)
        tk = _pick_div_tile(Kp, tk)
        grid = (Mp // tm, Np // tn, Kp // tk)

        x_spec = pl.BlockSpec((tm, tk), lambda i, j, k: (i, k))
        w_spec = pl.BlockSpec((tn, tk), lambda i, j, k: (j, k))
        o_spec = pl.BlockSpec((tm, tn), lambda i, j, k: (i, j))
        scratch = [pltpu.VMEM((tm, tn), jnp.float32)]
        compiler_params = pltpu.CompilerParams(
            dimension_semantics=("parallel", "parallel", "arbitrary"),
            vmem_limit_bytes=_VMEM_LIMIT)

        if bias is not None:
            b_spec = pl.BlockSpec((1, tn), lambda i, j, k: (0, j))
            out = pl.pallas_call(
                functools.partial(_stream_kernel_bias, scale=scale),
                out_shape=out_shape,
                grid_spec=pltpu.PrefetchScalarGridSpec(
                    num_scalar_prefetch=0, grid=grid,
                    in_specs=[x_spec, w_spec, b_spec],
                    out_specs=o_spec,
                    scratch_shapes=scratch),
                compiler_params=compiler_params,
            )(xp, wp, bp)
        else:
            out = pl.pallas_call(
                functools.partial(_stream_kernel_nobias, scale=scale),
                out_shape=out_shape,
                grid_spec=pltpu.PrefetchScalarGridSpec(
                    num_scalar_prefetch=0, grid=grid,
                    in_specs=[x_spec, w_spec],
                    out_specs=o_spec,
                    scratch_shapes=scratch),
                compiler_params=compiler_params,
            )(xp, wp)

    if (Mp, Np) != (M, c_out):
        out = out[:M, :c_out]
    return out.reshape(orig_shape[:-1] + (c_out,))


if __name__ == "__main__":
    key = jax.random.PRNGKey(0)
    kx, kw, kx2, kw2 = jax.random.split(key, 4)

    # --- Small case matching the module defaults (resident-weight fast path). ---
    batch, c_in, c_out = 8, 32, 16
    # Deterministic param init mirroring __init__: weight ~ N(0,1), bias = 0.
    weight = jax.random.normal(kw, (c_out, c_in), dtype=jnp.float32)
    bias = jnp.zeros((c_out,), dtype=jnp.float32)
    x = jax.random.normal(kx, (batch, c_in), dtype=jnp.float32)
    scale = sqrt(2.0) / sqrt(c_in)

    y = jax.block_until_ready(equalized_linear_forward(x, weight, bias))
    y_ref = jnp.dot(x, (weight * scale).T,
                    precision=lax.Precision.HIGHEST) + bias
    assert y.shape == (batch, c_out)
    assert jnp.allclose(y, y_ref, atol=1e-4, rtol=1e-4)

    # bias=None path (no zero-bias DMA).
    y_nb = jax.block_until_ready(equalized_linear_forward(x, weight, None))
    y_nb_ref = jnp.dot(x, (weight * scale).T, precision=lax.Precision.HIGHEST)
    assert jnp.allclose(y_nb, y_nb_ref, atol=1e-4, rtol=1e-4)

    # --- Larger-K case that exercises the streaming (3-D grid) fallback. ---
    M2, c_in2, c_out2 = 48, 2176, 128   # Kp=2176 > resident cap -> streaming path
    weight2 = jax.random.normal(kw2, (c_out2, c_in2), dtype=jnp.float32)
    bias2 = jnp.zeros((c_out2,), dtype=jnp.float32)
    x2 = jax.random.normal(kx2, (M2, c_in2), dtype=jnp.float32)
    scale2 = sqrt(2.0) / sqrt(c_in2)

    y2 = jax.block_until_ready(equalized_linear_forward(x2, weight2, bias2))
    y2_ref = jnp.dot(x2, (weight2 * scale2).T,
                     precision=lax.Precision.HIGHEST) + bias2
    assert y2.shape == (M2, c_out2)
    assert jnp.allclose(y2, y2_ref, atol=1e-4, rtol=1e-4)

    print("KERNEL_OK")
</pallas_src>

<mosaic_0001>
module attributes {stable_mosaic.version = 11 : i64} {
  func.func @_resident_kernel_bias(%arg0: i32, %arg1: memref<8x128xf32, #tpu.memory_space<vmem>>, %arg2: memref<128x128xf32, #tpu.memory_space<vmem>>, %arg3: memref<1x128xf32, #tpu.memory_space<vmem>>, %arg4: memref<8x128xf32, #tpu.memory_space<vmem>>) attributes {dimension_semantics = [#tpu.dimension_semantics<parallel>], iteration_bounds = array<i64: 1>, scalar_prefetch = 0 : i64, scratch_operands = 0 : i64, tpu.core_type = #tpu.core_type<tc>, window_params = [{transform_indices = @transform_0, window_bounds = array<i64: 8, 128>}, {pipeline_mode = #tpu.pipeline_mode<synchronous>, transform_indices = @transform_1, window_bounds = array<i64: 128, 128>}, {pipeline_mode = #tpu.pipeline_mode<synchronous>, transform_indices = @transform_2, window_bounds = array<i64: 1, 128>}, {transform_indices = @transform_3, window_bounds = array<i64: 8, 128>}]} {
    %c0 = arith.constant 0 : index
    %c0_0 = arith.constant 0 : index
    %0 = vector.load %arg1[%c0, %c0_0] : memref<8x128xf32, #tpu.memory_space<vmem>>, vector<8x128xf32>
    %c0_1 = arith.constant 0 : index
    %c0_2 = arith.constant 0 : index
    %1 = vector.load %arg2[%c0_1, %c0_2] : memref<128x128xf32, #tpu.memory_space<vmem>>, vector<128x128xf32>
    %cst = arith.constant dense<0.000000e+00> : vector<8x128xf32>
    %2 = tpu.matmul %0, %1, %cst {dimension_numbers = #tpu.dot_dimension_numbers<[1], [1], [0], [0], [0, 0, 1, 0], [], []>} : vector<8x128xf32>, vector<128x128xf32>, vector<8x128xf32> -> vector<8x128xf32>
    %cst_3 = arith.constant 2.500000e-01 : f32
    %3 = vector.broadcast %cst_3 : f32 to vector<8x128xf32>
    %4 = arith.mulf %2, %3 : vector<8x128xf32>
    %c0_4 = arith.constant 0 : index
    %c0_5 = arith.constant 0 : index
    %5 = vector.load %arg3[%c0_4, %c0_5] : memref<1x128xf32, #tpu.memory_space<vmem>>, vector<1x128xf32>
    %6 = vector.broadcast %5 : vector<1x128xf32> to vector<8x128xf32>
    %7 = arith.addf %4, %6 : vector<8x128xf32>
    %c0_6 = arith.constant 0 : index
    %c0_7 = arith.constant 0 : index
    %8 = vector.load %arg4[%c0_6, %c0_7] : memref<8x128xf32, #tpu.memory_space<vmem>>, vector<8x128xf32>
    tpu.vector_store %arg4[%c0_6, %c0_7], %7 {strides = array<i32>} : memref<8x128xf32, #tpu.memory_space<vmem>>, vector<8x128xf32>,
    return
  }
  func.func @transform_0(%arg0: i32) -> (i32, i32) {
    %c0_i32 = arith.constant 0 : i32
    %c0_i32_0 = arith.constant 0 : i32
    return %arg0, %c0_i32 : i32, i32
  }
  func.func @transform_1(%arg0: i32) -> (i32, i32) {
    %c0_i32 = arith.constant 0 : i32
    %c0_i32_0 = arith.constant 0 : i32
    %c0_i32_1 = arith.constant 0 : i32
    return %c0_i32, %c0_i32_0 : i32, i32
  }
  func.func @transform_2(%arg0: i32) -> (i32, i32) {
    %c0_i32 = arith.constant 0 : i32
    %c0_i32_0 = arith.constant 0 : i32
    %c0_i32_1 = arith.constant 0 : i32
    return %c0_i32, %c0_i32_0 : i32, i32
  }
  func.func @transform_3(%arg0: i32) -> (i32, i32) {
    %c0_i32 = arith.constant 0 : i32
    %c0_i32_0 = arith.constant 0 : i32
    return %arg0, %c0_i32 : i32, i32
  }
}

</mosaic_0001>

<llo_original>
// kernel: tpu_custom_call.1
$region0: #{tpu_custom_call.1}
  #allocation0 [shape = 'u32[]', space=smem, size = 0x4, offset = 0x4, fixed_abs, tag = 'smem constant byte address 0x4 - core index']
  #allocation1 [shape = 'u32[144,128]{1,0:T(1,128)}', space=vmem, size = 0x12000, scoped, tag = 'internal scratch']
  %s0 = inlined_call_operand.hbm [shape: f32[8,128], index: 0, kind: input, shape index: {}]
  %s1 = inlined_call_operand.hbm [shape: f32[128,128], index: 1, kind: input, shape index: {}]
  %s2 = inlined_call_operand.vmem [shape: f32[1,128], index: 2, kind: input, shape index: {}]
  %s3 = inlined_call_operand.hbm [shape: f32[8,128], index: 3, kind: output, shape index: {}]
  %s4 = sld [smem:[#allocation0]]
  $region30: #{tpu_custom_call.1} parent=0
    _
  %s6 = ssub.s32 1, %s4
  %s7 = scalar_select 0, %s6, %s4
  $region1: #{tpu_custom_call.1} parent=0
    #allocation2 [shape = 'u8[4096]{0}', space=vmem, size = 0x1000, scoped, tag = 'input window, operand 0, single buffered']
    #allocation3 [shape = 's32[1]{0}', space=sflag, size = 0x4, scoped, tag = 'scoped memory for tpu_custom_call.1']
    #allocation4 [shape = 's32[1]{0}', space=sflag, size = 0x4, scoped, tag = 'scoped memory for tpu_custom_call.1']
    #allocation5 [shape = 'u8[65536]{0}', space=vmem, size = 0x10000, scoped, tag = 'input window, operand 1, single buffered']
    #allocation6 [shape = 's32[1]{0}', space=sflag, size = 0x4, scoped, tag = 'scoped memory for tpu_custom_call.1']
    #allocation7 [shape = 'u8[4096]{0}', space=vmem, size = 0x1000, scoped, tag = 'output window, operand 0, single buffered']
    %8 = vsyncpa [#allocation3], 0
    %9 = vsyncpa [#allocation6], 0
    %10 = vsyncpa [#allocation4], 0
    // Predicated region
    $region2: #{tpu_custom_call.1} parent=1 // pred_check
      _
    $region3: #{tpu_custom_call.1} parent=1 // pred_check_branch
      %12 = sbr.rel (0) target = $region5
    $region4: #{tpu_custom_call.1} parent=1 // pred_region
      %s14 = ssub.s32 128, 128
      %15 = vsyncadd [#allocation3], %s14
      %s17 = sshll.u32 [#allocation2], 4
      %s18 = int_to_ptr.vmem [resolvable:$true] %s17
      %20 = dma.hbm_to_vmem [thread:$0]  %s0, 128, %s18, [#allocation3]
    $region5: #{tpu_custom_call.1} parent=1 // pred_fallthru
      _
    // Predicated region
    $region6: #{tpu_custom_call.1} parent=1 // pred_check
      _
    $region7: #{tpu_custom_call.1} parent=1 // pred_check_branch
      %22 = sbr.rel (0) target = $region9
    $region8: #{tpu_custom_call.1} parent=1 // pred_region
      %s24 = ssub.s32 2048, 2048
      %25 = vsyncadd [#allocation6], %s24
      %s26 = sshll.u32 [#allocation5], 4
      %s27 = int_to_ptr.vmem [resolvable:$true] %s26
      %32 = dma.hbm_to_vmem [thread:$0]  %s1, 2048, %s27, [#allocation6], 128, 128, 8
    $region9: #{tpu_custom_call.1} parent=1 // pred_fallthru
      _
    // Predicated region
    $region10: #{tpu_custom_call.1} parent=1 // pred_check
      _
    $region11: #{tpu_custom_call.1} parent=1 // pred_check_branch
      %34 = sbr.rel (0) target = $region13
    $region12: #{tpu_custom_call.1} parent=1 // pred_region
      _
    $region13: #{tpu_custom_call.1} parent=1 // pred_fallthru
      _
    // Predicated region
    $region14: #{tpu_custom_call.1} parent=1 // pred_check
      _
    $region15: #{tpu_custom_call.1} parent=1 // pred_check_branch
      %36 = sbr.rel (0) target = $region17
    $region16: #{tpu_custom_call.1} parent=1 // pred_region
      %37 = dma.done [#allocation3], 128
    $region17: #{tpu_custom_call.1} parent=1 // pred_fallthru
      _
    // Predicated region
    $region18: #{tpu_custom_call.1} parent=1 // pred_check
      _
    $region19: #{tpu_custom_call.1} parent=1 // pred_check_branch
      %39 = sbr.rel (0) target = $region21
    $region20: #{tpu_custom_call.1} parent=1 // pred_region
      %40 = dma.done [#allocation6], 2048
    $region21: #{tpu_custom_call.1} parent=1 // pred_fallthru
      _
    %v41 = vld [vmem:[#allocation2] sm:$0xff]
    %v42 = vld [vmem:[#allocation5] sm:$0xff]
    %v43 = vld [vmem:[#allocation5 + $0x8] sm:$0xff]
    %v44 = vld [vmem:[#allocation5 + $0x10] sm:$0xff]
    %v45 = vld [vmem:[#allocation5 + $0x18] sm:$0xff]
    %v46 = vld [vmem:[#allocation5 + $0x20] sm:$0xff]
    %v47 = vld [vmem:[#allocation5 + $0x28] sm:$0xff]
    %v48 = vld [vmem:[#allocation5 + $0x30] sm:$0xff]
    %v49 = vld [vmem:[#allocation5 + $0x38] sm:$0xff]
    %v50 = vld [vmem:[#allocation5 + $0x40] sm:$0xff]
    %v51 = vld [vmem:[#allocation5 + $0x48] sm:$0xff]
    %v52 = vld [vmem:[#allocation5 + $0x50] sm:$0xff]
    %v53 = vld [vmem:[#allocation5 + $0x58] sm:$0xff]
    %v54 = vld [vmem:[#allocation5 + $0x60] sm:$0xff]
    %v55 = vld [vmem:[#allocation5 + $0x68] sm:$0xff]
    %v56 = vld [vmem:[#allocation5 + $0x70] sm:$0xff]
    %v57 = vld [vmem:[#allocation5 + $0x78] sm:$0xff]
    %58 = vmatprep.subr.mxu0 0.0
    %59 = vmatpush1.xpose.msra.mxu0 %v42
    %60 = vmatprep.subr.mxu0 0.0
    %61 = vmatpush1.xpose.msra.mxu0 %v43
    %62 = vmatprep.subr.mxu0 0.0
    %63 = vmatpush1.xpose.msra.mxu0 %v44
    %64 = vmatprep.subr.mxu0 0.0
    %65 = vmatpush1.xpose.msra.mxu0 %v45
    %66 = vmatprep.subr.mxu0 0.0
    %67 = vmatpush1.xpose.msra.mxu0 %v46
    %68 = vmatprep.subr.mxu0 0.0
    %69 = vmatpush1.xpose.msra.mxu0 %v47
    %70 = vmatprep.subr.mxu0 0.0
    %71 = vmatpush1.xpose.msra.mxu0 %v48
    %72 = vmatprep.subr.mxu0 0.0
    %73 = vmatpush1.xpose.msra.mxu0 %v49
    %74 = vmatprep.subr.mxu0 0.0
    %75 = vmatpush1.xpose.msra.mxu0 %v50
    %76 = vmatprep.subr.mxu0 0.0
    %77 = vmatpush1.xpose.msra.mxu0 %v51
    %78 = vmatprep.subr.mxu0 0.0
    %79 = vmatpush1.xpose.msra.mxu0 %v52
    %80 = vmatprep.subr.mxu0 0.0
    %81 = vmatpush1.xpose.msra.mxu0 %v53
    %82 = vmatprep.subr.mxu0 0.0
    %83 = vmatpush1.xpose.msra.mxu0 %v54
    %84 = vmatprep.subr.mxu0 0.0
    %85 = vmatpush1.xpose.msra.mxu0 %v55
    %86 = vmatprep.subr.mxu0 0.0
    %87 = vmatpush1.xpose.msra.mxu0 %v56
    %88 = vmatprep.subr.mxu0 0.0
    %89 = vmatpush1.xpose.msra.mxu0 %v57
    %90 = vmatprep.subr.mxu0 0.0
    %91 = vmatpush1.xpose.msra.mxu0 0.0
    %92 = vmatprep.subr.mxu0 0.0
    %93 = vmatpush1.xpose.msra.mxu0 0.0
    %94 = vmatprep.subr.mxu0 0.0
    %95 = vmatpush1.xpose.msra.mxu0 0.0
    %96 = vmatprep.subr.mxu0 0.0
    %97 = vmatpush1.xpose.msra.mxu0 0.0
    %98 = vmatprep.subr.mxu0 0.0
    %99 = vmatpush1.xpose.msra.mxu0 0.0
    %100 = vmatprep.subr.mxu0 0.0
    %101 = vmatpush1.xpose.msra.mxu0 0.0
    %102 = vmatprep.subr.mxu0 0.0
    %103 = vmatpush1.xpose.msra.mxu0 0.0
    %104 = vmatprep.subr.mxu0 0.0
    %105 = vmatpush1.xpose.msra.mxu0 0.0
    %106 = vmatprep.subr.mxu0 0.0
    %107 = vmatpush1.xpose.msra.mxu0 0.0
    %108 = vmatprep.subr.mxu0 0.0
    %109 = vmatpush1.xpose.msra.mxu0 0.0
    %110 = vmatprep.subr.mxu0 0.0
    %111 = vmatpush1.xpose.msra.mxu0 0.0
    %112 = vmatprep.subr.mxu0 0.0
    %113 = vmatpush1.xpose.msra.mxu0 0.0
    %114 = vmatprep.subr.mxu0 0.0
    %115 = vmatpush1.xpose.msra.mxu0 0.0
    %116 = vmatprep.subr.mxu0 0.0
    %117 = vmatpush1.xpose.msra.mxu0 0.0
    %118 = vmatprep.subr.mxu0 0.0
    %119 = vmatpush1.xpose.msra.mxu0 0.0
    %120 = vmatprep.subr.mxu0 0.0
    %121 = vmatpush1.xpose.msra.mxu0 0.0
    %122 = vmatprep.mubr.f32.mxu0 0.0
    %123 = vmatmul.mubr.f32.gmra.mrb[0].mxu0 %v41
    %v124 = vpop.f32.mrb[0].mxu0
    %v125 = vadd.f32 0.0, %v124
    %v126 = vpop.f32.mrb[0].mxu0
    %127 = vdwg.mxu0
    %v128 = vmul.f32 %v125, 0.25
    %v129 = vld [vmem:[%s2] sm:$0x1]
    %v131 = vlaneseq
    %v132 = vshrl.u32 %v131, 7
    %v133 = vsub.s32 0, %v132
    %v134 = vrot.slane %v129, %v133
    %v136 = vadd.f32 %v128, %v134
    %137 = vst [vmem:[#allocation7] sm:$0xff] %v136
    // Predicated region
    $region22: #{tpu_custom_call.1} parent=1 // pred_check
      _
    $region23: #{tpu_custom_call.1} parent=1 // pred_check_branch
      %139 = sbr.rel (0) target = $region25
    $region24: #{tpu_custom_call.1} parent=1 // pred_region
      %s141 = ssub.s32 128, 128
      %142 = vsyncadd [#allocation4], %s141
      %s144 = sshll.u32 [#allocation7], 4
      %s145 = int_to_ptr.vmem [resolvable:$true] %s144
      %147 = dma.vmem_to_hbm [thread:$0]  %s145, 128, %s3, [#allocation4]
    $region25: #{tpu_custom_call.1} parent=1 // pred_fallthru
      _
    // Predicated region
    $region26: #{tpu_custom_call.1} parent=1 // pred_check
      _
    $region27: #{tpu_custom_call.1} parent=1 // pred_check_branch
      %149 = sbr.rel (0) target = $region29
    $region28: #{tpu_custom_call.1} parent=1 // pred_region
      %150 = dma.done [#allocation4], 128
    $region29: #{tpu_custom_call.1} parent=1 // pred_fallthru
      _
    %151 = vsyncpa [#allocation3], 1
    %152 = vsyncpa [#allocation6], 1
    %153 = vsyncpa [#allocation4], 1

</llo_original>
